<compile_context>
chip_gen: v7x
topology: tpu7x:2x2x1
jax: 0.10.0
libtpu: 0.0.40
codegen_flags: <defaults>
</compile_context>

<pallas_src>
import functools

import jax
import jax.numpy as jnp
from jax.experimental import pallas as pl
from jax.experimental.pallas import tpu as pltpu


def _ffn_kernel(x_ref, w1_ref, b1_ref, w2_ref, b2_ref, o_ref, acc_ref):
    # x_ref : (tm, d_model)      w1_ref : (d_model, tk)   b1_ref : (1, tk)
    # w2_ref: (tk, d_model)      b2_ref : (1, d_model)
    # o_ref : (tm, d_model)      acc_ref: (tm, d_model) f32 scratch
    k = pl.program_id(1)

    @pl.when(k == 0)
    def _():
        # Fold b2 into the accumulator init; this is off the steady-state
        # critical path and removes a broadcast+add from the epilogue.
        acc_ref[...] = jnp.broadcast_to(
            b2_ref[...].astype(jnp.float32), acc_ref.shape)

    x = x_ref[...]

    # Partial first linear + bias + ReLU for this d_ff slice (f32 MXU accum).
    h = jnp.dot(x, w1_ref[...], preferred_element_type=jnp.float32)
    h = jnp.maximum(h + b1_ref[...].astype(jnp.float32), 0.0)

    # Dropout: identity in inference mode.

    # Accumulate the partial second linear.  The intermediate is fed back to
    # the MXU in the compute dtype (no-op for f32; bf16 is the default feed).
    acc_ref[...] += jnp.dot(h.astype(x.dtype), w2_ref[...],
                            preferred_element_type=jnp.float32)

    @pl.when(k == pl.num_programs(1) - 1)
    def _():
        o_ref[...] = acc_ref[...].astype(o_ref.dtype)


def _round_up(x, m):
    return ((x + m - 1) // m) * m


def _sublane_pack(dtype):
    # 8 rows per vreg for 32-bit, 16 for bf16, 32 for 8-bit dtypes.
    return max(8, 32 // jnp.dtype(dtype).itemsize)


def _chip_defaults():
    """Per-generation (block_rows, block_ff, vmem_limit_bytes, n_cores)."""
    kind = ""
    try:
        kind = jax.devices()[0].device_kind.lower()
    except Exception:  # pragma: no cover - defensive
        pass
    if "v5" in kind:      # v5e/v5p: 128 MiB VMEM, ridge ~240 FLOPs/B
        return 512, 512, 100 * 1024 * 1024, 1
    if "v6" in kind:      # v6e: 128 MiB VMEM, ridge ~650 FLOPs/B
        return 1024, 512, 100 * 1024 * 1024, 1
    if "7" in kind:       # v7x: 64 MiB VMEM per TC, 2 TCs/chip
        return 512, 256, 52 * 1024 * 1024, 2
    # Unknown chip: conservative numbers that fit a 64 MiB VMEM.
    return 512, 256, 48 * 1024 * 1024, 1


def _pick_ff_tile(d_ff, max_tile):
    """Return (tk, d_ff_padded): tk multiple of 128, d_ff_padded % tk == 0."""
    max_tile = max(128, (max_tile // 128) * 128)
    d_ff_p = _round_up(d_ff, 128)
    if d_ff_p <= max_tile:
        return d_ff_p, d_ff_p
    t = max_tile
    while t >= 128:
        if d_ff_p % t == 0:
            return t, d_ff_p
        t -= 128
    # No clean divisor of the 128-padded d_ff: pad d_ff up to a multiple of
    # the cap instead of falling back to full-resident W1/W2.
    return max_tile, _round_up(d_ff, max_tile)


def _resolve_compute_dtype(compute_dtype, x_dtype):
    if compute_dtype == "auto":
        # bf16 MXU feeds by default (f32 jnp.dot lowers to multi-pass matmuls).
        return jnp.dtype(jnp.bfloat16) if x_dtype == jnp.float32 else x_dtype
    if compute_dtype is None:
        return jnp.dtype(x_dtype)
    return jnp.dtype(compute_dtype)


@functools.partial(jax.jit,
                   static_argnames=("block_rows", "block_ff", "compute_dtype"))
def pw_feedforward(x, w1, b1, w2, b2, *, block_rows=None, block_ff=None,
                   compute_dtype="auto"):
    """Position-wise FFN.  x: [..., d_model] -> [..., d_model]."""
    orig_shape = x.shape
    out_dtype = x.dtype
    d_model = orig_shape[-1]
    d_ff = w1.shape[1]

    chip_rows, chip_ff, vmem_limit, n_cores = _chip_defaults()
    if block_rows is None:
        block_rows = chip_rows
    if block_ff is None:
        block_ff = chip_ff

    # Cast the MXU feeds (default bf16); accumulation stays f32 in the kernel.
    cdt = _resolve_compute_dtype(compute_dtype, x.dtype)
    x = x.astype(cdt)
    w1 = w1.astype(cdt)
    b1 = b1.astype(cdt)
    w2 = w2.astype(cdt)
    b2 = b2.astype(cdt)

    # Flatten leading dims into a token axis.
    x2d = x.reshape(-1, d_model)
    n_tokens = x2d.shape[0]
    itemsize = jnp.dtype(cdt).itemsize
    pack = _sublane_pack(cdt)

    # d_ff reduction tile + zero-padding of the hidden dimension if needed
    # (padded W1 cols / b1 entries / W2 rows are zero -> contribute exactly 0).
    tk, d_ff_pad = _pick_ff_tile(d_ff, block_ff)
    if d_ff_pad != d_ff:
        w1 = jnp.pad(w1, ((0, 0), (0, d_ff_pad - d_ff)))
        b1 = jnp.pad(b1, ((0, d_ff_pad - d_ff),))
        w2 = jnp.pad(w2, ((0, d_ff_pad - d_ff), (0, 0)))

    # Row tile: multiple of the dtype's sublane packing, <= block_rows.
    tm = _round_up(min(block_rows, n_tokens), pack)
    if n_cores > 1:
        # Make grid[0] >= 2 so the "parallel" row axis shards across both TCs.
        tm = min(tm, max(pack, _round_up(-(-n_tokens // n_cores), pack)))

    # VMEM budget check: shrink tm if the tile set would not fit the limit.
    def _vmem_bytes(tm_, tk_):
        return (2 * tm_ * d_model * itemsize          # x tile, double-buffered
                + 2 * tm_ * d_model * itemsize        # out tile, double-buffered
                + tm_ * d_model * 4                   # f32 accumulator scratch
                + 2 * 2 * d_model * tk_ * itemsize    # W1 + W2 double buffers
                + 2 * (tk_ + d_model) * itemsize)     # biases
    while _vmem_bytes(tm, tk) > int(0.85 * vmem_limit) and tm > pack:
        tm = max(pack, _round_up(tm // 2, pack))

    n_pad = (-n_tokens) % tm
    if n_pad:  # pad only when the row tile does not divide the token count
        x2d = jnp.pad(x2d, ((0, n_pad), (0, 0)))
    n_rows = x2d.shape[0]

    # Biases as (1, F) so they broadcast cleanly inside the kernel.
    b1_2d = b1.reshape(1, d_ff_pad)
    b2_2d = b2.reshape(1, d_model)

    grid = (n_rows // tm, d_ff_pad // tk)

    nbytes = lambda a: a.size * jnp.dtype(a.dtype).itemsize
    cost = pl.CostEstimate(
        flops=4 * n_rows * d_model * d_ff_pad,
        transcendentals=0,
        # W1/W2 are re-streamed once per row tile (k is the inner grid axis).
        bytes_accessed=(2 * nbytes(x2d)
                        + grid[0] * (nbytes(w1) + nbytes(w2))
                        + nbytes(b1_2d) + nbytes(b2_2d)),
    )

    out = pl.pallas_call(
        _ffn_kernel,
        out_shape=jax.ShapeDtypeStruct((n_rows, d_model), out_dtype),
        grid_spec=pltpu.PrefetchScalarGridSpec(
            num_scalar_prefetch=0,
            grid=grid,
            in_specs=[
                # activations: tile over rows, resident across the k axis
                pl.BlockSpec((tm, d_model), lambda i, k: (i, 0)),
                # W1 column block / b1 slice for this k step
                pl.BlockSpec((d_model, tk), lambda i, k: (0, k)),
                pl.BlockSpec((1, tk), lambda i, k: (0, k)),
                # W2 row block for this k step
                pl.BlockSpec((tk, d_model), lambda i, k: (k, 0)),
                # b2: grid-constant
                pl.BlockSpec((1, d_model), lambda i, k: (0, 0)),
            ],
            out_specs=pl.BlockSpec((tm, d_model), lambda i, k: (i, 0)),
            scratch_shapes=[pltpu.VMEM((tm, d_model), jnp.float32)],
        ),
        compiler_params=pltpu.CompilerParams(
            dimension_semantics=("parallel", "arbitrary"),
            vmem_limit_bytes=vmem_limit,
        ),
        cost_estimate=cost,
    )(x2d, w1, b1_2d, w2, b2_2d)

    if n_pad:
        out = out[:n_tokens]
    return out.reshape(orig_shape)


def init_params(key, d_model, d_ff, dtype=jnp.float32):
    """Deterministic init mirroring nn.Linear's U(-1/sqrt(fan_in), 1/sqrt(fan_in))."""
    k1, k2, k3, k4 = jax.random.split(key, 4)
    lim1 = 1.0 / jnp.sqrt(d_model)
    lim2 = 1.0 / jnp.sqrt(d_ff)
    # Stored pre-transposed: w1 is (d_model, d_ff) == torch weight.T
    w1 = jax.random.uniform(k1, (d_model, d_ff), dtype, -lim1, lim1)
    b1 = jax.random.uniform(k2, (d_ff,), dtype, -lim1, lim1)
    w2 = jax.random.uniform(k3, (d_ff, d_model), dtype, -lim2, lim2)
    b2 = jax.random.uniform(k4, (d_model,), dtype, -lim2, lim2)
    return w1, b1, w2, b2


if __name__ == "__main__":
    key = jax.random.PRNGKey(0)
    batch, seq, d_model, d_ff = 2, 8, 32, 256

    kx, kp = jax.random.split(key)
    x = jax.random.normal(kx, (batch, seq, d_model), jnp.float32)
    w1, b1, w2, b2 = init_params(kp, d_model, d_ff)

    # Pure-JAX reference (inference-mode dropout == identity).
    y_ref = jnp.maximum(x @ w1 + b1, 0.0) @ w2 + b2

    # 1) Default path: chip-tuned tiles, bf16 MXU feeds + f32 accumulation.
    y = jax.block_until_ready(pw_feedforward(x, w1, b1, w2, b2))
    assert y.shape == x.shape and y.dtype == x.dtype
    assert jnp.allclose(y, y_ref, atol=1e-1, rtol=1e-1)

    # 2) Explicit f32 MXU feeds: tight tolerance against the reference.
    y32 = jax.block_until_ready(
        pw_feedforward(x, w1, b1, w2, b2, compute_dtype="float32"))
    assert jnp.allclose(y32, y_ref, atol=1e-5, rtol=1e-5)

    # 3) Small tiles: exercise multi-tile grid on both axes (2 row blocks x
    #    2 k blocks) and the accumulator-reduction / b2-init path.
    y3 = jax.block_until_ready(
        pw_feedforward(x, w1, b1, w2, b2, block_rows=8, block_ff=128,
                       compute_dtype="float32"))
    assert jnp.allclose(y3, y_ref, atol=1e-5, rtol=1e-5)

    print("KERNEL_OK")
</pallas_src>

<mosaic_0001>
module attributes {stable_mosaic.version = 11 : i64} {
  func.func @_ffn_kernel(%arg0: i32, %arg1: i32, %arg2: memref<16x32xbf16, #tpu.memory_space<vmem>>, %arg3: memref<32x256xbf16, #tpu.memory_space<vmem>>, %arg4: memref<1x256xbf16, #tpu.memory_space<vmem>>, %arg5: memref<256x32xbf16, #tpu.memory_space<vmem>>, %arg6: memref<1x32xbf16, #tpu.memory_space<vmem>>, %arg7: memref<16x32xf32, #tpu.memory_space<vmem>>, %arg8: memref<16x32xf32, #tpu.memory_space<vmem>>) attributes {dimension_semantics = [#tpu.dimension_semantics<parallel>, #tpu.dimension_semantics<arbitrary>], iteration_bounds = array<i64: 1, 1>, scalar_prefetch = 0 : i64, scratch_operands = 1 : i64, tpu.core_type = #tpu.core_type<tc>, window_params = [{transform_indices = @transform_0, window_bounds = array<i64: 16, 32>}, {transform_indices = @transform_1, window_bounds = array<i64: 32, 256>}, {transform_indices = @transform_2, window_bounds = array<i64: 1, 256>}, {transform_indices = @transform_3, window_bounds = array<i64: 256, 32>}, {pipeline_mode = #tpu.pipeline_mode<synchronous>, transform_indices = @transform_4, window_bounds = array<i64: 1, 32>}, {transform_indices = @transform_5, window_bounds = array<i64: 16, 32>}]} {
    %c0_i32 = arith.constant 0 : i32
    %0 = arith.cmpi eq, %arg1, %c0_i32 : i32
    %1 = arith.extui %0 : i1 to i32
    %c0_i32_0 = arith.constant 0 : i32
    %2 = arith.cmpi ne, %1, %c0_i32_0 : i32
    scf.if %2 {
      %c0_16 = arith.constant 0 : index
      %c0_17 = arith.constant 0 : index
      %21 = vector.load %arg6[%c0_16, %c0_17] : memref<1x32xbf16, #tpu.memory_space<vmem>>, vector<1x32xbf16>
      %22 = arith.extf %21 : vector<1x32xbf16> to vector<1x32xf32>
      %23 = vector.shape_cast %22 : vector<1x32xf32> to vector<1x32xf32>
      %24 = vector.broadcast %23 : vector<1x32xf32> to vector<16x32xf32>
      %c0_18 = arith.constant 0 : index
      %c0_19 = arith.constant 0 : index
      %25 = vector.load %arg8[%c0_18, %c0_19] : memref<16x32xf32, #tpu.memory_space<vmem>>, vector<16x32xf32>
      tpu.vector_store %arg8[%c0_18, %c0_19], %24 {strides = array<i32>} : memref<16x32xf32, #tpu.memory_space<vmem>>, vector<16x32xf32>,
    } else {
    }
    %c0 = arith.constant 0 : index
    %c0_1 = arith.constant 0 : index
    %3 = vector.load %arg2[%c0, %c0_1] : memref<16x32xbf16, #tpu.memory_space<vmem>>, vector<16x32xbf16>
    %c0_2 = arith.constant 0 : index
    %c0_3 = arith.constant 0 : index
    %4 = vector.load %arg3[%c0_2, %c0_3] : memref<32x256xbf16, #tpu.memory_space<vmem>>, vector<32x256xbf16>
    %cst = arith.constant dense<0.000000e+00> : vector<16x256xf32>
    %5 = tpu.matmul %3, %4, %cst {dimension_numbers = #tpu.dot_dimension_numbers<[1], [0], [0], [1], [0, 0, 1, 1], [], []>} : vector<16x32xbf16>, vector<32x256xbf16>, vector<16x256xf32> -> vector<16x256xf32>
    %c0_4 = arith.constant 0 : index
    %c0_5 = arith.constant 0 : index
    %6 = vector.load %arg4[%c0_4, %c0_5] : memref<1x256xbf16, #tpu.memory_space<vmem>>, vector<1x256xbf16>
    %7 = arith.extf %6 : vector<1x256xbf16> to vector<1x256xf32>
    %8 = vector.broadcast %7 : vector<1x256xf32> to vector<16x256xf32>
    %9 = arith.addf %5, %8 : vector<16x256xf32>
    %cst_6 = arith.constant 0.000000e+00 : f32
    %10 = vector.broadcast %cst_6 : f32 to vector<16x256xf32>
    %11 = arith.maximumf %9, %10 : vector<16x256xf32>
    %c0_7 = arith.constant 0 : index
    %c0_8 = arith.constant 0 : index
    %12 = vector.load %arg8[%c0_7, %c0_8] : memref<16x32xf32, #tpu.memory_space<vmem>>, vector<16x32xf32>
    %13 = arith.truncf %11 : vector<16x256xf32> to vector<16x256xbf16>
    %c0_9 = arith.constant 0 : index
    %c0_10 = arith.constant 0 : index
    %14 = vector.load %arg5[%c0_9, %c0_10] : memref<256x32xbf16, #tpu.memory_space<vmem>>, vector<256x32xbf16>
    %cst_11 = arith.constant dense<0.000000e+00> : vector<16x32xf32>
    %15 = tpu.matmul %13, %14, %cst_11 {dimension_numbers = #tpu.dot_dimension_numbers<[1], [0], [0], [1], [0, 0, 1, 1], [], []>} : vector<16x256xbf16>, vector<256x32xbf16>, vector<16x32xf32> -> vector<16x32xf32>
    %16 = arith.addf %12, %15 : vector<16x32xf32>
    %c0_12 = arith.constant 0 : index
    %c0_13 = arith.constant 0 : index
    %17 = vector.load %arg8[%c0_12, %c0_13] : memref<16x32xf32, #tpu.memory_space<vmem>>, vector<16x32xf32>
    tpu.vector_store %arg8[%c0_12, %c0_13], %16 {strides = array<i32>} : memref<16x32xf32, #tpu.memory_space<vmem>>, vector<16x32xf32>,
    %c0_i32_14 = arith.constant 0 : i32
    %18 = arith.cmpi eq, %arg1, %c0_i32_14 : i32
    %19 = arith.extui %18 : i1 to i32
    %c0_i32_15 = arith.constant 0 : i32
    %20 = arith.cmpi ne, %19, %c0_i32_15 : i32
    scf.if %20 {
      %c0_16 = arith.constant 0 : index
      %c0_17 = arith.constant 0 : index
      %21 = vector.load %arg8[%c0_16, %c0_17] : memref<16x32xf32, #tpu.memory_space<vmem>>, vector<16x32xf32>
      %c0_18 = arith.constant 0 : index
      %c0_19 = arith.constant 0 : index
      %22 = vector.load %arg7[%c0_18, %c0_19] : memref<16x32xf32, #tpu.memory_space<vmem>>, vector<16x32xf32>
      tpu.vector_store %arg7[%c0_18, %c0_19], %21 {strides = array<i32>} : memref<16x32xf32, #tpu.memory_space<vmem>>, vector<16x32xf32>,
    } else {
    }
    return
  }
  func.func @transform_0(%arg0: i32, %arg1: i32) -> (i32, i32) {
    %c0_i32 = arith.constant 0 : i32
    %c0_i32_0 = arith.constant 0 : i32
    return %arg0, %c0_i32 : i32, i32
  }
  func.func @transform_1(%arg0: i32, %arg1: i32) -> (i32, i32) {
    %c0_i32 = arith.constant 0 : i32
    %c0_i32_0 = arith.constant 0 : i32
    return %c0_i32, %arg1 : i32, i32
  }
  func.func @transform_2(%arg0: i32, %arg1: i32) -> (i32, i32) {
    %c0_i32 = arith.constant 0 : i32
    %c0_i32_0 = arith.constant 0 : i32
    return %c0_i32, %arg1 : i32, i32
  }
  func.func @transform_3(%arg0: i32, %arg1: i32) -> (i32, i32) {
    %c0_i32 = arith.constant 0 : i32
    %c0_i32_0 = arith.constant 0 : i32
    return %arg1, %c0_i32 : i32, i32
  }
  func.func @transform_4(%arg0: i32, %arg1: i32) -> (i32, i32) {
    %c0_i32 = arith.constant 0 : i32
    %c0_i32_0 = arith.constant 0 : i32
    %c0_i32_1 = arith.constant 0 : i32
    return %c0_i32, %c0_i32_0 : i32, i32
  }
  func.func @transform_5(%arg0: i32, %arg1: i32) -> (i32, i32) {
    %c0_i32 = arith.constant 0 : i32
    %c0_i32_0 = arith.constant 0 : i32
    return %arg0, %c0_i32 : i32, i32
  }
}

</mosaic_0001>

<llo_original>
// kernel: pw_feedforward.1
$region0: #{pw_feedforward.1}
  #allocation0 [shape = 'u32[]', space=smem, size = 0x4, offset = 0x4, fixed_abs, tag = 'smem constant byte address 0x4 - core index']
  #allocation1 [shape = 'u32[144,128]{1,0:T(1,128)}', space=vmem, size = 0x12000, scoped, tag = 'internal scratch']
  #allocation2 [shape = 'f32[16,32]{1,0:T(8,128)}', space=vmem, size = 0x2000, scoped, tag = 'scratch operand']
  %s0 = inlined_call_operand.vmem [shape: bf16[16,32], index: 0, kind: input, shape index: {}]
  %s1 = inlined_call_operand.vmem [shape: bf16[32,256], index: 1, kind: input, shape index: {}]
  %s2 = inlined_call_operand.vmem [shape: bf16[1,256], index: 2, kind: input, shape index: {}]
  %s3 = inlined_call_operand.vmem [shape: bf16[256,32], index: 3, kind: input, shape index: {}]
  %s4 = inlined_call_operand.vmem [shape: bf16[1,32], index: 4, kind: input, shape index: {}]
  %s5 = inlined_call_operand.hbm [shape: f32[16,32], index: 5, kind: output, shape index: {}]
  %s6 = sld [smem:[#allocation0]]
  $region38: #{pw_feedforward.1} parent=0
    _
  %s8 = ssub.s32 1, %s6
  %s9 = scalar_select 0, %s8, %s6
  $region1: #{pw_feedforward.1} parent=0
    #allocation3 [shape = 'u8[8192]{0}', space=vmem, size = 0x2000, scoped, tag = 'output window, operand 0, single buffered']
    #allocation4 [shape = 's32[1]{0}', space=sflag, size = 0x4, scoped, tag = 'scoped memory for pw_feedforward.1']
    %10 = vsyncpa [#allocation4], 0
    // Predicated region
    $region2: #{pw_feedforward.1} parent=1 // pred_check
      _
    $region3: #{pw_feedforward.1} parent=1 // pred_check_branch
      %12 = sbr.rel (0) target = $region5
    $region4: #{pw_feedforward.1} parent=1 // pred_region
      _
    $region5: #{pw_feedforward.1} parent=1 // pred_fallthru
      _
    // Predicated region
    $region6: #{pw_feedforward.1} parent=1 // pred_check
      _
    $region7: #{pw_feedforward.1} parent=1 // pred_check_branch
      %14 = sbr.rel (0) target = $region9
    $region8: #{pw_feedforward.1} parent=1 // pred_region
      _
    $region9: #{pw_feedforward.1} parent=1 // pred_fallthru
      _
    // Predicated region
    $region10: #{pw_feedforward.1} parent=1 // pred_check
      _
    $region11: #{pw_feedforward.1} parent=1 // pred_check_branch
      %16 = sbr.rel (0) target = $region13
    $region12: #{pw_feedforward.1} parent=1 // pred_region
      _
    $region13: #{pw_feedforward.1} parent=1 // pred_fallthru
      _
    // Predicated region
    $region14: #{pw_feedforward.1} parent=1 // pred_check
      _
    $region15: #{pw_feedforward.1} parent=1 // pred_check_branch
      %18 = sbr.rel (0) target = $region17
    $region16: #{pw_feedforward.1} parent=1 // pred_region
      _
    $region17: #{pw_feedforward.1} parent=1 // pred_fallthru
      _
    // Predicated region
    $region18: #{pw_feedforward.1} parent=1 // pred_check
      _
    $region19: #{pw_feedforward.1} parent=1 // pred_check_branch
      %20 = sbr.rel (0) target = $region21
    $region20: #{pw_feedforward.1} parent=1 // pred_region
      _
    $region21: #{pw_feedforward.1} parent=1 // pred_fallthru
      _
    %p22 = scmp.eq.s32.totalorder 0, 0
    // Predicated region
    $region22: #{pw_feedforward.1} parent=1 // pred_check
      %p23 = pneg %p22
    $region23: #{pw_feedforward.1} parent=1 // pred_check_branch
      %25 = sbr.rel (%p23) target = $region25
    $region24: #{pw_feedforward.1} parent=1 // pred_region
      %v26 = vld [vmem:[%s4] sm:$0x1]
      %v27 = vunpack.c.l.bf16 %v26
      %v28 = vlaneseq
      %v29 = vshrl.u32 %v28, 7
      %v30 = vsub.s32 0, %v29
      %v31 = vrot.slane %v27, %v30
      %vm32 = vcmask 261120
      %33 = vst.msk [vmem:[#allocation2] sm:$0xff] %vm32, %v31
      %34 = vst.msk [vmem:[#allocation2 + $0x8] sm:$0xff] %vm32, %v31
    $region25: #{pw_feedforward.1} parent=1 // pred_fallthru
      _
    %v35 = vld [vmem:[%s0] sm:$0xf]
    %v36 = vld [vmem:[%s0 + $0x4] sm:$0xf]
    %v37 = vld [vmem:[%s1] sm:$0xff]
    %v38 = vld [vmem:[%s1 + $0x8] sm:$0xff]
    %v39 = vld [vmem:[%s1 + $0x10] sm:$0xff]
    %v40 = vld [vmem:[%s1 + $0x18] sm:$0xff]
    %v41 = vld [vmem:[%s2] sm:$0x3]
    %v42 = vunpack.c.l.bf16 %v41
    %v44 = vlaneseq
    %v45 = vshrl.u32 %v44, 7
    %v46 = vsub.s32 0, %v45
    %v47 = vrot.slane %v42, %v46
    %v48 = vlaneseq
    %v49 = vshrl.u32 %v48, 7
    %v50 = vsub.s32 2, %v49
    %v51 = vrot.slane %v42, %v50
    %v54 = vlaneseq
    %v55 = vshrl.u32 %v54, 7
    %v56 = vsub.s32 0, %v55
    %v57 = vrot.slane %v47, %v56
    %v58 = vlaneseq
    %v59 = vshrl.u32 %v58, 7
    %v60 = vsub.s32 0, %v59
    %v61 = vrot.slane %v51, %v60
    %v64 = vunpack.c.l.b16 %v35
    %v65 = vunpack.c.l.b16 %v36
    %v66 = vpack.c.b16 %v65, %v64
    %v71 = vunpack.c.l.b16 %v37
    %v72 = vunpack.c.h.b16 %v37
    %v73 = vunpack.c.l.b16 %v38
    %v74 = vunpack.c.h.b16 %v38
    %v75 = vunpack.c.l.b16 %v39
    %v76 = vunpack.c.h.b16 %v39
    %v77 = vunpack.c.l.b16 %v40
    %v78 = vunpack.c.h.b16 %v40
    %v79 = vpack.c.b16 %v73, %v71
    %v80 = vpack.c.b16 %v74, %v72
    %v81 = vpack.c.b16 %v77, %v75
    %v82 = vpack.c.b16 %v78, %v76
    %vm87 = vcmask 261120
    %v89 = vsel %vm87, %v66, 0
    %91 = vmatprep.subr.bf16.mxu0 %v80
    %92 = vmatpush1.bf16.msra.mxu0 %v79
    %93 = vmatprep.subr.bf16.mxu0 %v82
    %94 = vmatpush1.bf16.msra.mxu0 %v81
    %95 = vmatprep.subr.bf16.mxu0 0
    %96 = vmatpush1.bf16.msra.mxu0 0
    %97 = vmatprep.subr.bf16.mxu0 0
    %98 = vmatpush1.bf16.msra.mxu0 0
    %99 = vmatprep.subr.bf16.mxu0 0
    %100 = vmatpush1.bf16.msra.mxu0 0
    %101 = vmatprep.subr.bf16.mxu0 0
    %102 = vmatpush1.bf16.msra.mxu0 0
    %103 = vmatprep.subr.bf16.mxu0 0
    %104 = vmatpush1.bf16.msra.mxu0 0
    %105 = vmatprep.subr.bf16.mxu0 0
    %106 = vmatpush1.bf16.msra.mxu0 0
    %107 = vmatprep.subr.bf16.mxu0 0
    %108 = vmatpush1.bf16.msra.mxu0 0
    %109 = vmatprep.subr.bf16.mxu0 0
    %110 = vmatpush1.bf16.msra.mxu0 0
    %111 = vmatprep.subr.bf16.mxu0 0
    %112 = vmatpush1.bf16.msra.mxu0 0
    %113 = vmatprep.subr.bf16.mxu0 0
    %114 = vmatpush1.bf16.msra.mxu0 0
    %115 = vmatprep.subr.bf16.mxu0 0
    %116 = vmatpush1.bf16.msra.mxu0 0
    %117 = vmatprep.subr.bf16.mxu0 0
    %118 = vmatpush1.bf16.msra.mxu0 0
    %119 = vmatprep.subr.bf16.mxu0 0
    %120 = vmatpush1.bf16.msra.mxu0 0
    %121 = vmatprep.subr.bf16.mxu0 0
    %122 = vmatpush1.bf16.msra.mxu0 0
    %123 = vmatprep.mubr.bf16.mxu0 0
    %124 = vmatmul.mubr.bf16.gmra.mrb[0].mxu0 %v89
    %v125 = vpop.f32.mrb[0].mxu0
    %v126 = vadd.f32 %v57, %v125
    %v127 = vpop.f32.mrb[0].mxu0
    %v128 = vadd.f32 %v61, %v127
    %v129 = vpop.f32.mrb[0].mxu0
    %v130 = vadd.f32 %v57, %v129
    %v131 = vpop.f32.mrb[0].mxu0
    %v132 = vadd.f32 %v61, %v131
    %133 = vdwg.mxu0
    %v134 = vmax.f32 %v126, 0.0
    %v135 = vmax.f32 %v128, 0.0
    %v136 = vmax.f32 %v130, 0.0
    %v137 = vmax.f32 %v132, 0.0
    %v138 = vld [vmem:[#allocation2] sm:$0xff]
    %v139 = vld [vmem:[#allocation2 + $0x8] sm:$0xff]
    %v140 = vpack.c.bf16 %v136, %v134
    %v141 = vpack.c.bf16 %v137, %v135
    %v142 = vld [vmem:[%s3] sm:$0xf]
    %v143 = vld [vmem:[%s3 + $0x4] sm:$0xf]
    %v144 = vld [vmem:[%s3 + $0x8] sm:$0xf]
    %v145 = vld [vmem:[%s3 + $0xc] sm:$0xf]
    %v146 = vld [vmem:[%s3 + $0x10] sm:$0xf]
    %v147 = vld [vmem:[%s3 + $0x14] sm:$0xf]
    %v148 = vld [vmem:[%s3 + $0x18] sm:$0xf]
    %v149 = vld [vmem:[%s3 + $0x1c] sm:$0xf]
    %v150 = vld [vmem:[%s3 + $0x20] sm:$0xf]
    %v151 = vld [vmem:[%s3 + $0x24] sm:$0xf]
    %v152 = vld [vmem:[%s3 + $0x28] sm:$0xf]
    %v153 = vld [vmem:[%s3 + $0x2c] sm:$0xf]
    %v154 = vld [vmem:[%s3 + $0x30] sm:$0xf]
    %v155 = vld [vmem:[%s3 + $0x34] sm:$0xf]
    %v156 = vld [vmem:[%s3 + $0x38] sm:$0xf]
    %v157 = vld [vmem:[%s3 + $0x3c] sm:$0xf]
    %v158 = vld [vmem:[%s3 + $0x40] sm:$0xf]
    %v159 = vld [vmem:[%s3 + $0x44] sm:$0xf]
    %v160 = vld [vmem:[%s3 + $0x48] sm:$0xf]
    %v161 = vld [vmem:[%s3 + $0x4c] sm:$0xf]
    %v162 = vld [vmem:[%s3 + $0x50] sm:$0xf]
    %v163 = vld [vmem:[%s3 + $0x54] sm:$0xf]
    %v164 = vld [vmem:[%s3 + $0x58] sm:$0xf]
    %v165 = vld [vmem:[%s3 + $0x5c] sm:$0xf]
    %v166 = vld [vmem:[%s3 + $0x60] sm:$0xf]
    %v167 = vld [vmem:[%s3 + $0x64] sm:$0xf]
    %v168 = vld [vmem:[%s3 + $0x68] sm:$0xf]
    %v169 = vld [vmem:[%s3 + $0x6c] sm:$0xf]
    %v170 = vld [vmem:[%s3 + $0x70] sm:$0xf]
    %v171 = vld [vmem:[%s3 + $0x74] sm:$0xf]
    %v172 = vld [vmem:[%s3 + $0x78] sm:$0xf]
    %v173 = vld [vmem:[%s3 + $0x7c] sm:$0xf]
    %v206 = vunpack.c.l.b16 %v142
    %v207 = vunpack.c.l.b16 %v143
    %v208 = vunpack.c.l.b16 %v144
    %v209 = vunpack.c.l.b16 %v145
    %v210 = vunpack.c.l.b16 %v146
    %v211 = vunpack.c.l.b16 %v147
    %v212 = vunpack.c.l.b16 %v148
    %v213 = vunpack.c.l.b16 %v149
    %v214 = vunpack.c.l.b16 %v150
    %v215 = vunpack.c.l.b16 %v151
    %v216 = vunpack.c.l.b16 %v152
    %v217 = vunpack.c.l.b16 %v153
    %v218 = vunpack.c.l.b16 %v154
    %v219 = vunpack.c.l.b16 %v155
    %v220 = vunpack.c.l.b16 %v156
    %v221 = vunpack.c.l.b16 %v157
    %v222 = vunpack.c.l.b16 %v158
    %v223 = vunpack.c.l.b16 %v159
    %v224 = vunpack.c.l.b16 %v160
    %v225 = vunpack.c.l.b16 %v161
    %v226 = vunpack.c.l.b16 %v162
    %v227 = vunpack.c.l.b16 %v163
    %v228 = vunpack.c.l.b16 %v164
    %v229 = vunpack.c.l.b16 %v165
    %v230 = vunpack.c.l.b16 %v166
    %v231 = vunpack.c.l.b16 %v167
    %v232 = vunpack.c.l.b16 %v168
    %v233 = vunpack.c.l.b16 %v169
    %v234 = vunpack.c.l.b16 %v170
    %v235 = vunpack.c.l.b16 %v171
    %v236 = vunpack.c.l.b16 %v172
    %v237 = vunpack.c.l.b16 %v173
    %v238 = vpack.c.b16 %v207, %v206
    %v239 = vpack.c.b16 %v209, %v208
    %v240 = vpack.c.b16 %v211, %v210
    %v241 = vpack.c.b16 %v213, %v212
    %v242 = vpack.c.b16 %v215, %v214
    %v243 = vpack.c.b16 %v217, %v216
    %v244 = vpack.c.b16 %v219, %v218
    %v245 = vpack.c.b16 %v221, %v220
    %v246 = vpack.c.b16 %v223, %v222
    %v247 = vpack.c.b16 %v225, %v224
    %v248 = vpack.c.b16 %v227, %v226
    %v249 = vpack.c.b16 %v229, %v228
    %v250 = vpack.c.b16 %v231, %v230
    %v251 = vpack.c.b16 %v233, %v232
    %v252 = vpack.c.b16 %v235, %v234
    %v253 = vpack.c.b16 %v237, %v236
    %270 = vmatprep.subr.bf16.mxu0 0
    %271 = vmatpush1.bf16.msra.mxu0 %v238
    %272 = vmatprep.subr.bf16.mxu0 0
    %273 = vmatpush1.bf16.msra.mxu0 %v239
    %274 = vmatprep.subr.bf16.mxu0 0
    %275 = vmatpush1.bf16.msra.mxu0 %v240
    %276 = vmatprep.subr.bf16.mxu0 0
    %277 = vmatpush1.bf16.msra.mxu0 %v241
    %278 = vmatprep.subr.bf16.mxu0 0
    %279 = vmatpush1.bf16.msra.mxu0 %v242
    %280 = vmatprep.subr.bf16.mxu0 0
    %281 = vmatpush1.bf16.msra.mxu0 %v243
    %282 = vmatprep.subr.bf16.mxu0 0
    %283 = vmatpush1.bf16.msra.mxu0 %v244
    %284 = vmatprep.subr.bf16.mxu0 0
    %285 = vmatpush1.bf16.msra.mxu0 %v245
    %286 = vmatprep.subr.bf16.mxu0 0
    %287 = vmatpush1.bf16.msra.mxu0 %v246
    %288 = vmatprep.subr.bf16.mxu0 0
    %289 = vmatpush1.bf16.msra.mxu0 %v247
    %290 = vmatprep.subr.bf16.mxu0 0
    %291 = vmatpush1.bf16.msra.mxu0 %v248
    %292 = vmatprep.subr.bf16.mxu0 0
    %293 = vmatpush1.bf16.msra.mxu0 %v249
    %294 = vmatprep.subr.bf16.mxu0 0
    %295 = vmatpush1.bf16.msra.mxu0 %v250
    %296 = vmatprep.subr.bf16.mxu0 0
    %297 = vmatpush1.bf16.msra.mxu0 %v251
    %298 = vmatprep.subr.bf16.mxu0 0
    %299 = vmatpush1.bf16.msra.mxu0 %v252
    %300 = vmatprep.subr.bf16.mxu0 0
    %301 = vmatpush1.bf16.msra.mxu0 %v253
    %302 = vmatprep.mubr.bf16.mxu0 %v141
    %303 = vmatmul.mubr.bf16.gmra.mrb[0].mxu0 %v140
    %v304 = vpop.f32.mrb[0].mxu0
    %v305 = vadd.f32 0.0, %v304
    %v306 = vpop.f32.mrb[0].mxu0
    %v307 = vpop.f32.mrb[0].mxu0
    %v308 = vadd.f32 0.0, %v307
    %v309 = vpop.f32.mrb[0].mxu0
    %310 = vdwg.mxu0
    %v311 = vadd.f32 %v138, %v305
    %v312 = vadd.f32 %v139, %v308
    %313 = vst.msk [vmem:[#allocation2] sm:$0xff] %vm87, %v311
    %314 = vst.msk [vmem:[#allocation2 + $0x8] sm:$0xff] %vm87, %v312
    // Predicated region
    $region26: #{pw_feedforward.1} parent=1 // pred_check
      %p315 = pneg %p22
    $region27: #{pw_feedforward.1} parent=1 // pred_check_branch
      %317 = sbr.rel (%p315) target = $region29
    $region28: #{pw_feedforward.1} parent=1 // pred_region
      %v318 = vld [vmem:[#allocation2] sm:$0xff]
      %v319 = vld [vmem:[#allocation2 + $0x8] sm:$0xff]
      %320 = vst.msk [vmem:[#allocation3] sm:$0xff] %vm87, %v318
      %321 = vst.msk [vmem:[#allocation3 + $0x8] sm:$0xff] %vm87, %v319
    $region29: #{pw_feedforward.1} parent=1 // pred_fallthru
      _
    // Predicated region
    $region30: #{pw_feedforward.1} parent=1 // pred_check
      _
    $region31: #{pw_feedforward.1} parent=1 // pred_check_branch
      %323 = sbr.rel (0) target = $region33
    $region32: #{pw_feedforward.1} parent=1 // pred_region
      %s325 = ssub.s32 256, 256
      %326 = vsyncadd [#allocation4], %s325
      %s327 = sshll.u32 [#allocation3], 4
      %s328 = int_to_ptr.vmem [resolvable:$true] %s327
      %333 = dma.vmem_to_hbm [thread:$0]  %s328, 256, %s5, [#allocation4], 128, 128, 8
    $region33: #{pw_feedforward.1} parent=1 // pred_fallthru
      _
    // Predicated region
    $region34: #{pw_feedforward.1} parent=1 // pred_check
      _
    $region35: #{pw_feedforward.1} parent=1 // pred_check_branch
      %335 = sbr.rel (0) target = $region37
    $region36: #{pw_feedforward.1} parent=1 // pred_region
      %336 = dma.done [#allocation4], 256
    $region37: #{pw_feedforward.1} parent=1 // pred_fallthru
      _
    %337 = vsyncpa [#allocation4], 1

</llo_original>
